<compile_context>
chip_gen: v5e
topology: v5e:2x2
jax: 0.10.0
libtpu: 0.0.40
codegen_flags: <defaults>
</compile_context>

<pallas_src>
import functools

import jax
import jax.numpy as jnp
import numpy as np
from jax import lax
from jax.experimental import pallas as pl
from jax.experimental.pallas import tpu as pltpu


def _round_up(x, m):
    return (x + m - 1) // m * m


# --------------------------------------------------------------------------
# Stage 1: SMEM-index row gather + tanh(alpha * Linear(.)) node vectors.
# --------------------------------------------------------------------------
def _node_vector_kernel(idx_ref, emb1_ref, emb2_ref, w1_ref, b1_ref,
                        w2_ref, b2_ref, nv1_ref, nv2_ref, *, n, alpha):
    # Zero-init the (padded) outputs; they double as the gather buffers.
    nv1_ref[...] = jnp.zeros_like(nv1_ref)
    nv2_ref[...] = jnp.zeros_like(nv2_ref)

    # Row gather driven by scalar SMEM indices (no one-hot matmul).
    def gather_row(i, carry):
        j = idx_ref[i]
        nv1_ref[pl.ds(i, 1), :] = emb1_ref[pl.ds(j, 1), :]
        nv2_ref[pl.ds(i, 1), :] = emb2_ref[pl.ds(j, 1), :]
        return carry

    lax.fori_loop(0, n, gather_row, 0)

    x1 = nv1_ref[...]
    x2 = nv2_ref[...]
    nv1 = jnp.tanh(alpha * (jnp.dot(x1, w1_ref[...],
                                    preferred_element_type=jnp.float32)
                            + b1_ref[...]))
    nv2 = jnp.tanh(alpha * (jnp.dot(x2, w2_ref[...],
                                    preferred_element_type=jnp.float32)
                            + b2_ref[...]))

    # Zero padded rows so padded adjacency columns are exactly 0 in stage 2.
    row = lax.broadcasted_iota(jnp.int32, nv1.shape, 0)
    valid = row < n
    nv1_ref[...] = jnp.where(valid, nv1, 0.0)
    nv2_ref[...] = jnp.where(valid, nv2, 0.0)


# --------------------------------------------------------------------------
# Stage 2: one (TM, n_pad) adjacency stripe + its row-wise top-k per grid step.
# --------------------------------------------------------------------------
def _adj_topk_kernel(nv1_ref, nv2_ref, noise_ref, adj_ref, *, k, alpha, tm):
    r0 = pl.multiple_of(pl.program_id(0) * tm, tm)
    nv1_blk = nv1_ref[pl.ds(r0, tm), :]                       # (tm, d_pad)
    nv2_blk = nv2_ref[pl.ds(r0, tm), :]

    # Contract over the feature axis of both operands: no transpose needed.
    dims = (((1,), (1,)), ((), ()))
    m12 = lax.dot_general(nv1_blk, nv2_ref[...], dims,
                          preferred_element_type=jnp.float32)  # (tm, n_pad)
    m21 = lax.dot_general(nv2_blk, nv1_ref[...], dims,
                          preferred_element_type=jnp.float32)  # (tm, n_pad)
    adj = jnp.maximum(jnp.tanh(alpha * (m12 - m21)), 0.0)

    # Row-wise top-k of (adj + noise*0.01): one XLU reduction per step.
    # Padded columns carry noise = -1 -> work = -0.01 < 0 <= any real work,
    # so they are never selected for k <= n.
    work = adj + noise_ref[...] * 0.01
    mask = jnp.zeros_like(adj)
    for _ in range(k):                                         # k: static int
        m = jnp.max(work, axis=1, keepdims=True)               # (tm, 1)
        sel = work == m                                        # first/only max
        mask = jnp.where(sel, 1.0, mask)
        work = jnp.where(sel, -1.0, work)

    adj_ref[...] = (adj * mask).astype(adj_ref.dtype)


# --------------------------------------------------------------------------
# Wrapper
# --------------------------------------------------------------------------
def graph_constructor_forward(idx, emb1_w, emb2_w, lin1_w, lin1_b,
                              lin2_w, lin2_b, noise, *, k, alpha):
    """idx: (n,) int; emb*_w: (nnodes, dim); lin*_w: (dim, dim); lin*_b: (dim,);
    noise: (n, n) uniform [0,1) tie-break noise (torch.rand_like equivalent)."""
    n = int(idx.shape[0])
    nnodes, dim = emb1_w.shape
    n_pad = _round_up(max(n, 8), 128)          # lane-dense rows/cols of adj
    d_pad = _round_up(dim, 128)                # lane-dense feature dim
    tm = 256 if (n_pad % 256 == 0) else 128    # row-stripe size
    f32 = jnp.float32

    def pad2(a, r, c):
        a = jnp.asarray(a, f32)
        return jnp.pad(a, ((0, r - a.shape[0]), (0, c - a.shape[1])))

    emb1_p = pad2(emb1_w, nnodes, d_pad)
    emb2_p = pad2(emb2_w, nnodes, d_pad)
    w1t_p = pad2(lin1_w.T, d_pad, d_pad)
    w2t_p = pad2(lin2_w.T, d_pad, d_pad)
    b1_p = pad2(lin1_b.reshape(1, dim), 1, d_pad)
    b2_p = pad2(lin2_b.reshape(1, dim), 1, d_pad)
    # Padded noise = -1 so padded columns never enter the top-k.
    noise_p = jnp.pad(noise.astype(f32),
                      ((0, n_pad - n), (0, n_pad - n)), constant_values=-1.0)

    smem_spec = pl.BlockSpec(memory_space=pltpu.MemorySpace.SMEM)
    vmem_spec = lambda: pl.BlockSpec(memory_space=pltpu.MemorySpace.VMEM)

    # ---- stage 1: node vectors (gridless, tiny) ----
    nv1, nv2 = pl.pallas_call(
        functools.partial(_node_vector_kernel, n=n, alpha=float(alpha)),
        out_shape=(jax.ShapeDtypeStruct((n_pad, d_pad), f32),
                   jax.ShapeDtypeStruct((n_pad, d_pad), f32)),
        in_specs=[smem_spec] + [vmem_spec() for _ in range(6)],
        out_specs=(vmem_spec(), vmem_spec()),
    )(idx.astype(jnp.int32), emb1_p, emb2_p, w1t_p, b1_p, w2t_p, b2_p)

    # ---- stage 2: adjacency stripes + top-k (row-block grid, parallel) ----
    adj_p = pl.pallas_call(
        functools.partial(_adj_topk_kernel, k=int(k), alpha=float(alpha), tm=tm),
        out_shape=jax.ShapeDtypeStruct((n_pad, n_pad), f32),
        grid=(n_pad // tm,),
        in_specs=[pl.BlockSpec((n_pad, d_pad), lambda i: (0, 0)),
                  pl.BlockSpec((n_pad, d_pad), lambda i: (0, 0)),
                  pl.BlockSpec((tm, n_pad), lambda i: (i, 0))],
        out_specs=pl.BlockSpec((tm, n_pad), lambda i: (i, 0)),
        compiler_params=pltpu.CompilerParams(
            dimension_semantics=("parallel",)),
    )(nv1, nv2, noise_p)

    return adj_p[:n, :n]


def graph_constructor_reference(idx, emb1_w, emb2_w, lin1_w, lin1_b,
                                lin2_w, lin2_b, noise, *, k, alpha):
    """Pure-JAX mirror of the PyTorch forward (same tie-break noise)."""
    nv1 = emb1_w[idx]
    nv2 = emb2_w[idx]
    nv1 = jnp.tanh(alpha * (nv1 @ lin1_w.T + lin1_b))
    nv2 = jnp.tanh(alpha * (nv2 @ lin2_w.T + lin2_b))
    a = nv1 @ nv2.T - nv2 @ nv1.T
    adj = jnp.maximum(jnp.tanh(alpha * a), 0.0)
    _, t1 = lax.top_k(adj + noise * 0.01, k)
    n = idx.shape[0]
    mask = jnp.zeros((n, n), adj.dtype).at[jnp.arange(n)[:, None], t1].set(1.0)
    return adj * mask


if __name__ == "__main__":
    # small shapes consistent with the module: nnodes=16, dim=32, k=4, alpha=3
    nnodes, dim, topk, alpha = 16, 32, 4, 3.0

    key = jax.random.PRNGKey(0)
    k1, k2, k3, k4, k5, k6, k7 = jax.random.split(key, 7)
    idx = jnp.arange(nnodes, dtype=jnp.int32)
    emb1_w = jax.random.normal(k1, (nnodes, dim), dtype=jnp.float32)
    emb2_w = jax.random.normal(k2, (nnodes, dim), dtype=jnp.float32)
    lin1_w = jax.random.normal(k3, (dim, dim), dtype=jnp.float32) / np.sqrt(dim)
    lin1_b = jax.random.normal(k4, (dim,), dtype=jnp.float32) * 0.1
    lin2_w = jax.random.normal(k5, (dim, dim), dtype=jnp.float32) / np.sqrt(dim)
    lin2_b = jax.random.normal(k6, (dim,), dtype=jnp.float32) * 0.1
    # torch.rand_like(adj) tie-break noise, precomputed so kernel & reference share it
    noise = jax.random.uniform(k7, (nnodes, nnodes), dtype=jnp.float32)

    out = graph_constructor_forward(idx, emb1_w, emb2_w, lin1_w, lin1_b,
                                    lin2_w, lin2_b, noise, k=topk, alpha=alpha)
    out = jax.block_until_ready(out)

    ref = graph_constructor_reference(idx, emb1_w, emb2_w, lin1_w, lin1_b,
                                      lin2_w, lin2_b, noise, k=topk, alpha=alpha)
    np.testing.assert_allclose(np.asarray(out), np.asarray(ref),
                               rtol=1e-4, atol=1e-4)

    print("KERNEL_OK")
</pallas_src>

<mosaic_0001>
module attributes {stable_mosaic.version = 11 : i64} {
  func.func @_node_vector_kernel(%arg0: memref<16xi32, #tpu.memory_space<smem>>, %arg1: memref<16x128xf32, #tpu.memory_space<vmem>>, %arg2: memref<16x128xf32, #tpu.memory_space<vmem>>, %arg3: memref<128x128xf32, #tpu.memory_space<vmem>>, %arg4: memref<1x128xf32, #tpu.memory_space<vmem>>, %arg5: memref<128x128xf32, #tpu.memory_space<vmem>>, %arg6: memref<1x128xf32, #tpu.memory_space<vmem>>, %arg7: memref<128x128xf32, #tpu.memory_space<vmem>>, %arg8: memref<128x128xf32, #tpu.memory_space<vmem>>) attributes {dimension_semantics = [], scalar_prefetch = 0 : i64, scratch_operands = 0 : i64, tpu.core_type = #tpu.core_type<tc>} {
    %cst = arith.constant 0.000000e+00 : f32
    %0 = vector.broadcast %cst : f32 to vector<128x128xf32>
    %c0 = arith.constant 0 : index
    %c0_0 = arith.constant 0 : index
    %1 = vector.load %arg7[%c0, %c0_0] : memref<128x128xf32, #tpu.memory_space<vmem>>, vector<128x128xf32>
    tpu.vector_store %arg7[%c0, %c0_0], %0 {strides = array<i32>} : memref<128x128xf32, #tpu.memory_space<vmem>>, vector<128x128xf32>,
    %cst_1 = arith.constant 0.000000e+00 : f32
    %2 = vector.broadcast %cst_1 : f32 to vector<128x128xf32>
    %c0_2 = arith.constant 0 : index
    %c0_3 = arith.constant 0 : index
    %3 = vector.load %arg8[%c0_2, %c0_3] : memref<128x128xf32, #tpu.memory_space<vmem>>, vector<128x128xf32>
    tpu.vector_store %arg8[%c0_2, %c0_3], %2 {strides = array<i32>} : memref<128x128xf32, #tpu.memory_space<vmem>>, vector<128x128xf32>,
    %c0_i32 = arith.constant 0 : i32
    %c16_i32 = arith.constant 16 : i32
    %4 = arith.addi %c0_i32, %c16_i32 : i32
    %c1_i32 = arith.constant 1 : i32
    scf.for %arg9 = %c0_i32 to %4 step %c1_i32  : i32 {
      %32 = arith.index_cast %arg9 : i32 to index
      %33 = memref.load %arg0[%32] : memref<16xi32, #tpu.memory_space<smem>>
      %34 = arith.index_cast %33 : i32 to index
      %c0_28 = arith.constant 0 : index
      %35 = vector.load %arg1[%34, %c0_28] : memref<16x128xf32, #tpu.memory_space<vmem>>, vector<1x128xf32>
      %36 = arith.index_cast %arg9 : i32 to index
      %c0_29 = arith.constant 0 : index
      %37 = vector.load %arg7[%36, %c0_29] : memref<128x128xf32, #tpu.memory_space<vmem>>, vector<1x128xf32>
      tpu.vector_store %arg7[%36, %c0_29], %35 {strides = array<i32>} : memref<128x128xf32, #tpu.memory_space<vmem>>, vector<1x128xf32>,
      %38 = arith.index_cast %33 : i32 to index
      %c0_30 = arith.constant 0 : index
      %39 = vector.load %arg2[%38, %c0_30] : memref<16x128xf32, #tpu.memory_space<vmem>>, vector<1x128xf32>
      %40 = arith.index_cast %arg9 : i32 to index
      %c0_31 = arith.constant 0 : index
      %41 = vector.load %arg8[%40, %c0_31] : memref<128x128xf32, #tpu.memory_space<vmem>>, vector<1x128xf32>
      tpu.vector_store %arg8[%40, %c0_31], %39 {strides = array<i32>} : memref<128x128xf32, #tpu.memory_space<vmem>>, vector<1x128xf32>,
    }
    %c16_i32_4 = arith.constant 16 : i32
    %c0_5 = arith.constant 0 : index
    %c0_6 = arith.constant 0 : index
    %5 = vector.load %arg7[%c0_5, %c0_6] : memref<128x128xf32, #tpu.memory_space<vmem>>, vector<128x128xf32>
    %c0_7 = arith.constant 0 : index
    %c0_8 = arith.constant 0 : index
    %6 = vector.load %arg8[%c0_7, %c0_8] : memref<128x128xf32, #tpu.memory_space<vmem>>, vector<128x128xf32>
    %c0_9 = arith.constant 0 : index
    %c0_10 = arith.constant 0 : index
    %7 = vector.load %arg3[%c0_9, %c0_10] : memref<128x128xf32, #tpu.memory_space<vmem>>, vector<128x128xf32>
    %cst_11 = arith.constant dense<0.000000e+00> : vector<128x128xf32>
    %8 = tpu.matmul %5, %7, %cst_11 {dimension_numbers = #tpu.dot_dimension_numbers<[1], [0], [0], [1], [0, 0, 1, 1], [], []>} : vector<128x128xf32>, vector<128x128xf32>, vector<128x128xf32> -> vector<128x128xf32>
    %c0_12 = arith.constant 0 : index
    %c0_13 = arith.constant 0 : index
    %9 = vector.load %arg4[%c0_12, %c0_13] : memref<1x128xf32, #tpu.memory_space<vmem>>, vector<1x128xf32>
    %10 = vector.broadcast %9 : vector<1x128xf32> to vector<128x128xf32>
    %11 = arith.addf %8, %10 : vector<128x128xf32>
    %cst_14 = arith.constant 3.000000e+00 : f32
    %12 = vector.broadcast %cst_14 : f32 to vector<128x128xf32>
    %13 = arith.mulf %12, %11 : vector<128x128xf32>
    %14 = math.tanh %13 : vector<128x128xf32>
    %c0_15 = arith.constant 0 : index
    %c0_16 = arith.constant 0 : index
    %15 = vector.load %arg5[%c0_15, %c0_16] : memref<128x128xf32, #tpu.memory_space<vmem>>, vector<128x128xf32>
    %cst_17 = arith.constant dense<0.000000e+00> : vector<128x128xf32>
    %16 = tpu.matmul %6, %15, %cst_17 {dimension_numbers = #tpu.dot_dimension_numbers<[1], [0], [0], [1], [0, 0, 1, 1], [], []>} : vector<128x128xf32>, vector<128x128xf32>, vector<128x128xf32> -> vector<128x128xf32>
    %c0_18 = arith.constant 0 : index
    %c0_19 = arith.constant 0 : index
    %17 = vector.load %arg6[%c0_18, %c0_19] : memref<1x128xf32, #tpu.memory_space<vmem>>, vector<1x128xf32>
    %18 = vector.broadcast %17 : vector<1x128xf32> to vector<128x128xf32>
    %19 = arith.addf %16, %18 : vector<128x128xf32>
    %cst_20 = arith.constant 3.000000e+00 : f32
    %20 = vector.broadcast %cst_20 : f32 to vector<128x128xf32>
    %21 = arith.mulf %20, %19 : vector<128x128xf32>
    %22 = math.tanh %21 : vector<128x128xf32>
    %23 = tpu.iota {dimensions = array<i32: 0>} : vector<128x128xi32>
    %c16_i32_21 = arith.constant 16 : i32
    %24 = vector.broadcast %c16_i32_21 : i32 to vector<128x128xi32>
    %25 = arith.cmpi slt, %23, %24 : vector<128x128xi32>
    %cst_22 = arith.constant 0.000000e+00 : f32
    %26 = vector.broadcast %cst_22 : f32 to vector<128x128xf32>
    %27 = arith.select %25, %14, %26 : vector<128x128xi1>, vector<128x128xf32>
    %c0_23 = arith.constant 0 : index
    %c0_24 = arith.constant 0 : index
    %28 = vector.load %arg7[%c0_23, %c0_24] : memref<128x128xf32, #tpu.memory_space<vmem>>, vector<128x128xf32>
    tpu.vector_store %arg7[%c0_23, %c0_24], %27 {strides = array<i32>} : memref<128x128xf32, #tpu.memory_space<vmem>>, vector<128x128xf32>,
    %cst_25 = arith.constant 0.000000e+00 : f32
    %29 = vector.broadcast %cst_25 : f32 to vector<128x128xf32>
    %30 = arith.select %25, %22, %29 : vector<128x128xi1>, vector<128x128xf32>
    %c0_26 = arith.constant 0 : index
    %c0_27 = arith.constant 0 : index
    %31 = vector.load %arg8[%c0_26, %c0_27] : memref<128x128xf32, #tpu.memory_space<vmem>>, vector<128x128xf32>
    tpu.vector_store %arg8[%c0_26, %c0_27], %30 {strides = array<i32>} : memref<128x128xf32, #tpu.memory_space<vmem>>, vector<128x128xf32>,
    return
  }
}

</mosaic_0001>

<llo_original>
// kernel: tpu_custom_call.1
$region0: #{tpu_custom_call.1}
  #allocation0 [shape = 'u32[]', space=smem, size = 0x4, offset = 0x4, fixed_abs, tag = 'smem constant byte address 0x4 - core index']
  #allocation1 [shape = 'u32[72,128]{1,0:T(1,128)}', space=vmem, size = 0x9000, scoped, tag = 'internal scratch']
  %s0 = inlined_call_operand.hbm [shape: s32[16], index: 0, kind: input, shape index: {}]
  %s1 = inlined_call_operand.hbm [shape: f32[16,128], index: 1, kind: input, shape index: {}]
  %s2 = inlined_call_operand.hbm [shape: f32[16,128], index: 2, kind: input, shape index: {}]
  %s3 = inlined_call_operand.hbm [shape: f32[128,128], index: 3, kind: input, shape index: {}]
  %s4 = inlined_call_operand.vmem [shape: f32[1,128], index: 4, kind: input, shape index: {}]
  %s5 = inlined_call_operand.hbm [shape: f32[128,128], index: 5, kind: input, shape index: {}]
  %s6 = inlined_call_operand.vmem [shape: f32[1,128], index: 6, kind: input, shape index: {}]
  %s7 = inlined_call_operand.hbm [shape: f32[128,128], index: 7, kind: output, shape index: {0}]
  %s8 = inlined_call_operand.hbm [shape: f32[128,128], index: 8, kind: output, shape index: {1}]
  %9 = xla_tuple %s7, %s8
  %s10 = sld [smem:[#allocation0]]
  $region73: #{tpu_custom_call.1} parent=0
    _
  %s12 = ssub.s32 1, %s10
  %s13 = scalar_select 0, %s12, %s10
  $region1: #{tpu_custom_call.1} parent=0
    #allocation2 [shape = 'u8[512]{0}', space=smem, size = 0x200, scoped, tag = 'input window, operand 0, single buffered']
    #allocation3 [shape = 's32[1]{0}', space=sflag, size = 0x4, scoped, tag = 'scoped memory for tpu_custom_call.1']
    #allocation4 [shape = 's32[1]{0}', space=sflag, size = 0x4, scoped, tag = 'scoped memory for tpu_custom_call.1']
    #allocation5 [shape = 's32[1]{0}', space=sflag, size = 0x4, scoped, tag = 'scoped memory for tpu_custom_call.1']
    #allocation6 [shape = 'u8[8192]{0}', space=vmem, size = 0x2000, scoped, tag = 'input window, operand 1, single buffered']
    #allocation7 [shape = 'u8[8192]{0}', space=vmem, size = 0x2000, scoped, tag = 'input window, operand 2, single buffered']
    #allocation8 [shape = 's32[1]{0}', space=sflag, size = 0x4, scoped, tag = 'scoped memory for tpu_custom_call.1']
    #allocation9 [shape = 'u8[65536]{0}', space=vmem, size = 0x10000, scoped, tag = 'input window, operand 3, single buffered']
    #allocation10 [shape = 'u8[65536]{0}', space=vmem, size = 0x10000, scoped, tag = 'input window, operand 5, single buffered']
    #allocation11 [shape = 's32[1]{0}', space=sflag, size = 0x4, scoped, tag = 'scoped memory for tpu_custom_call.1']
    #allocation12 [shape = 'u8[65536]{0}', space=vmem, size = 0x10000, scoped, tag = 'output window, operand 0, single buffered']
    #allocation13 [shape = 'u8[65536]{0}', space=vmem, size = 0x10000, scoped, tag = 'output window, operand 1, single buffered']
    #allocation14 [shape = 's32[1]{0}', space=sflag, size = 0x4, scoped, tag = 'scoped memory for tpu_custom_call.1']
    %14 = vsyncpa [#allocation5], 0
    %15 = vsyncpa [#allocation3], 0
    %16 = vsyncpa [#allocation8], 0
    %17 = vsyncpa [#allocation11], 0
    %18 = vsyncpa [#allocation4], 0
    %19 = vsyncpa [#allocation14], 0
    // Predicated region
    $region2: #{tpu_custom_call.1} parent=1 // pred_check
      _
    $region3: #{tpu_custom_call.1} parent=1 // pred_check_branch
      %21 = sbr.rel (0) target = $region5
    $region4: #{tpu_custom_call.1} parent=1 // pred_region
      %23 = vsyncadd [#allocation5], 0
      %s25 = sshll.u32 %s0, 4
      %s26 = int_to_ptr.hbm [resolvable:$true] %s25
      %28 = dma.hbm_to_smem %s26, 16, [#allocation2], [#allocation5]
    $region5: #{tpu_custom_call.1} parent=1 // pred_fallthru
      _
    // Predicated region
    $region6: #{tpu_custom_call.1} parent=1 // pred_check
      _
    $region7: #{tpu_custom_call.1} parent=1 // pred_check_branch
      %30 = sbr.rel (0) target = $region9
    $region8: #{tpu_custom_call.1} parent=1 // pred_region
      %32 = vsyncadd [#allocation3], 0
      %s33 = sshll.u32 %s1, 4
      %s34 = int_to_ptr.hbm [resolvable:$true] %s33
      %s35 = sshll.u32 [#allocation6], 4
      %s36 = int_to_ptr.vmem [resolvable:$true] %s35
      %41 = dma.hbm_to_vmem [thread:$0]  %s34, 256, %s36, [#allocation3], 128, 128, 8
    $region9: #{tpu_custom_call.1} parent=1 // pred_fallthru
      _
    // Predicated region
    $region10: #{tpu_custom_call.1} parent=1 // pred_check
      _
    $region11: #{tpu_custom_call.1} parent=1 // pred_check_branch
      %43 = sbr.rel (0) target = $region13
    $region12: #{tpu_custom_call.1} parent=1 // pred_region
      %45 = vsyncadd [#allocation8], 0
      %s46 = sshll.u32 %s2, 4
      %s47 = int_to_ptr.hbm [resolvable:$true] %s46
      %s48 = sshll.u32 [#allocation7], 4
      %s49 = int_to_ptr.vmem [resolvable:$true] %s48
      %54 = dma.hbm_to_vmem [thread:$0]  %s47, 256, %s49, [#allocation8], 128, 128, 8
    $region13: #{tpu_custom_call.1} parent=1 // pred_fallthru
      _
    // Predicated region
    $region14: #{tpu_custom_call.1} parent=1 // pred_check
      _
    $region15: #{tpu_custom_call.1} parent=1 // pred_check_branch
      %56 = sbr.rel (0) target = $region17
    $region16: #{tpu_custom_call.1} parent=1 // pred_region
      %58 = vsyncadd [#allocation8], 0
      %s59 = sshll.u32 %s3, 4
      %s60 = int_to_ptr.hbm [resolvable:$true] %s59
      %s61 = sshll.u32 [#allocation9], 4
      %s62 = int_to_ptr.vmem [resolvable:$true] %s61
      %67 = dma.hbm_to_vmem [thread:$0]  %s60, 2048, %s62, [#allocation8], 128, 128, 8
    $region17: #{tpu_custom_call.1} parent=1 // pred_fallthru
      _
    // Predicated region
    $region18: #{tpu_custom_call.1} parent=1 // pred_check
      _
    $region19: #{tpu_custom_call.1} parent=1 // pred_check_branch
      %69 = sbr.rel (0) target = $region21
    $region20: #{tpu_custom_call.1} parent=1 // pred_region
      _
    $region21: #{tpu_custom_call.1} parent=1 // pred_fallthru
      _
    // Predicated region
    $region22: #{tpu_custom_call.1} parent=1 // pred_check
      _
    $region23: #{tpu_custom_call.1} parent=1 // pred_check_branch
      %71 = sbr.rel (0) target = $region25
    $region24: #{tpu_custom_call.1} parent=1 // pred_region
      %73 = vsyncadd [#allocation11], 0
      %s74 = sshll.u32 %s5, 4
      %s75 = int_to_ptr.hbm [resolvable:$true] %s74
      %s76 = sshll.u32 [#allocation10], 4
      %s77 = int_to_ptr.vmem [resolvable:$true] %s76
      %82 = dma.hbm_to_vmem [thread:$0]  %s75, 2048, %s77, [#allocation11], 128, 128, 8
    $region25: #{tpu_custom_call.1} parent=1 // pred_fallthru
      _
    // Predicated region
    $region26: #{tpu_custom_call.1} parent=1 // pred_check
      _
    $region27: #{tpu_custom_call.1} parent=1 // pred_check_branch
      %84 = sbr.rel (0) target = $region29
    $region28: #{tpu_custom_call.1} parent=1 // pred_region
      _
    $region29: #{tpu_custom_call.1} parent=1 // pred_fallthru
      _
    // Predicated region
    $region30: #{tpu_custom_call.1} parent=1 // pred_check
      _
    $region31: #{tpu_custom_call.1} parent=1 // pred_check_branch
      %86 = sbr.rel (0) target = $region33
    $region32: #{tpu_custom_call.1} parent=1 // pred_region
      %88 = dma.done [#allocation5], 16
    $region33: #{tpu_custom_call.1} parent=1 // pred_fallthru
      _
    // Predicated region
    $region34: #{tpu_custom_call.1} parent=1 // pred_check
      _
    $region35: #{tpu_custom_call.1} parent=1 // pred_check_branch
      %90 = sbr.rel (0) target = $region37
    $region36: #{tpu_custom_call.1} parent=1 // pred_region
      %92 = dma.done [#allocation3], 256
    $region37: #{tpu_custom_call.1} parent=1 // pred_fallthru
      _
    // Predicated region
    $region38: #{tpu_custom_call.1} parent=1 // pred_check
      _
    $region39: #{tpu_custom_call.1} parent=1 // pred_check_branch
      %94 = sbr.rel (0) target = $region41
    $region40: #{tpu_custom_call.1} parent=1 // pred_region
      %96 = dma.done [#allocation8], 256
    $region41: #{tpu_custom_call.1} parent=1 // pred_fallthru
      _
    // Predicated region
    $region42: #{tpu_custom_call.1} parent=1 // pred_check
      _
    $region43: #{tpu_custom_call.1} parent=1 // pred_check_branch
      %98 = sbr.rel (0) target = $region45
    $region44: #{tpu_custom_call.1} parent=1 // pred_region
      %100 = dma.done [#allocation8], 2048
    $region45: #{tpu_custom_call.1} parent=1 // pred_fallthru
      _
    // Predicated region
    $region46: #{tpu_custom_call.1} parent=1 // pred_check
      _
    $region47: #{tpu_custom_call.1} parent=1 // pred_check_branch
      %102 = sbr.rel (0) target = $region49
    $region48: #{tpu_custom_call.1} parent=1 // pred_region
      %104 = dma.done [#allocation11], 2048
    $region49: #{tpu_custom_call.1} parent=1 // pred_fallthru
      _
    %105 = sfence
    %106 = vst [vmem:[#allocation12] sm:$0xff] 0.0
    %107 = vst [vmem:[#allocation12 + $0x8] sm:$0xff] 0.0
    %108 = vst [vmem:[#allocation12 + $0x10] sm:$0xff] 0.0
    %109 = vst [vmem:[#allocation12 + $0x18] sm:$0xff] 0.0
    %110 = vst [vmem:[#allocation12 + $0x20] sm:$0xff] 0.0
    %111 = vst [vmem:[#allocation12 + $0x28] sm:$0xff] 0.0
    %112 = vst [vmem:[#allocation12 + $0x30] sm:$0xff] 0.0
    %113 = vst [vmem:[#allocation12 + $0x38] sm:$0xff] 0.0
    %114 = vst [vmem:[#allocation12 + $0x40] sm:$0xff] 0.0
    %115 = vst [vmem:[#allocation12 + $0x48] sm:$0xff] 0.0
    %116 = vst [vmem:[#allocation12 + $0x50] sm:$0xff] 0.0
    %117 = vst [vmem:[#allocation12 + $0x58] sm:$0xff] 0.0
    %118 = vst [vmem:[#allocation12 + $0x60] sm:$0xff] 0.0
    %119 = vst [vmem:[#allocation12 + $0x68] sm:$0xff] 0.0
    %120 = vst [vmem:[#allocation12 + $0x70] sm:$0xff] 0.0
    %121 = vst [vmem:[#allocation12 + $0x78] sm:$0xff] 0.0
    %122 = vst [vmem:[#allocation13] sm:$0xff] 0.0
    %123 = vst [vmem:[#allocation13 + $0x8] sm:$0xff] 0.0
    %124 = vst [vmem:[#allocation13 + $0x10] sm:$0xff] 0.0
    %125 = vst [vmem:[#allocation13 + $0x18] sm:$0xff] 0.0
    %126 = vst [vmem:[#allocation13 + $0x20] sm:$0xff] 0.0
    %127 = vst [vmem:[#allocation13 + $0x28] sm:$0xff] 0.0
    %128 = vst [vmem:[#allocation13 + $0x30] sm:$0xff] 0.0
    %129 = vst [vmem:[#allocation13 + $0x38] sm:$0xff] 0.0
    %130 = vst [vmem:[#allocation13 + $0x40] sm:$0xff] 0.0
    %131 = vst [vmem:[#allocation13 + $0x48] sm:$0xff] 0.0
    %132 = vst [vmem:[#allocation13 + $0x50] sm:$0xff] 0.0
    %133 = vst [vmem:[#allocation13 + $0x58] sm:$0xff] 0.0
    %134 = vst [vmem:[#allocation13 + $0x60] sm:$0xff] 0.0
    %135 = vst [vmem:[#allocation13 + $0x68] sm:$0xff] 0.0
    %136 = vst [vmem:[#allocation13 + $0x70] sm:$0xff] 0.0
    %137 = vst [vmem:[#allocation13 + $0x78] sm:$0xff] 0.0
    loop: start=0, step=1, limit=16
    $region50: #{tpu_custom_call.1} parent=1 // loop_pre_header
      _
    $region51: #{tpu_custom_call.1} parent=1 // loop_header
      %s139 = sphi 0, %s143
      %p140 = scmp.ge.s32.totalorder %s139, 16
    $region52: #{tpu_custom_call.1} parent=1 // loop_header_branch
      %142 = sbr.rel (%p140) target = $region56
    $region53: #{tpu_custom_call.1} parent=1 // loop_body
      %s144 = sld [smem:[#allocation2 + %s139]]
      %s145 = scalar_lea.vmem [#allocation6], %s144
      %v146 = vld [vmem:[%s145] sm:$0x1]
      %s147 = scalar_lea.vmem [#allocation12], %s139
      %148 = vst [vmem:[%s147] sm:$0x1] %v146
      %s149 = scalar_lea.vmem [#allocation7], %s144
      %v150 = vld [vmem:[%s149] sm:$0x1]
      %s151 = scalar_lea.vmem [#allocation13], %s139
      %152 = vst [vmem:[%s151] sm:$0x1] %v150
    $region54: #{tpu_custom_call.1} parent=1 // loop_footer
      %s143 = sadd.s32 1, %s139
    $region55: #{tpu_custom_call.1} parent=1 // loop_footer_branch
      %138 = sbr.rel target = $region51
    $region56: #{tpu_custom_call.1} parent=1 // loop_exit
      _
    %v153 = vld [vmem:[#allocation12] sm:$0xff]
    %v154 = vld [vmem:[#allocation12 + $0x8] sm:$0xff]
    %v155 = vld [vmem:[#allocation12 + $0x10] sm:$0xff]
    %v156 = vld [vmem:[#allocation12 + $0x18] sm:$0xff]
    %v157 = vld [vmem:[#allocation12 + $0x20] sm:$0xff]
    %v158 = vld [vmem:[#allocation12 + $0x28] sm:$0xff]
    %v159 = vld [vmem:[#allocation12 + $0x30] sm:$0xff]
    %v160 = vld [vmem:[#allocation12 + $0x38] sm:$0xff]
    %v161 = vld [vmem:[#allocation12 + $0x40] sm:$0xff]
    %v162 = vld [vmem:[#allocation12 + $0x48] sm:$0xff]
    %v163 = vld [vmem:[#allocation12 + $0x50] sm:$0xff]
    %v164 = vld [vmem:[#allocation12 + $0x58] sm:$0xff]
    %v165 = vld [vmem:[#allocation12 + $0x60] sm:$0xff]
    %v166 = vld [vmem:[#allocation12 + $0x68] sm:$0xff]
    %v167 = vld [vmem:[#allocation12 + $0x70] sm:$0xff]
    %v168 = vld [vmem:[#allocation12 + $0x78] sm:$0xff]
    %v169 = vld [vmem:[#allocation13] sm:$0xff]
    %v170 = vld [vmem:[#allocation13 + $0x8] sm:$0xff]
    %v171 = vld [vmem:[#allocation13 + $0x10] sm:$0xff]
    %v172 = vld [vmem:[#allocation13 + $0x18] sm:$0xff]
    %v173 = vld [vmem:[#allocation13 + $0x20] sm:$0xff]
    %v174 = vld [vmem:[#allocation13 + $0x28] sm:$0xff]
    %v175 = vld [vmem:[#allocation13 + $0x30] sm:$0xff]
    %v176 = vld [vmem:[#allocation13 + $0x38] sm:$0xff]
    %v177 = vld [vmem:[#allocation13 + $0x40] sm:$0xff]
    %v178 = vld [vmem:[#allocation13 + $0x48] sm:$0xff]
    %v179 = vld [vmem:[#allocation13 + $0x50] sm:$0xff]
    %v180 = vld [vmem:[#allocation13 + $0x58] sm:$0xff]
    %v181 = vld [vmem:[#allocation13 + $0x60] sm:$0xff]
    %v182 = vld [vmem:[#allocation13 + $0x68] sm:$0xff]
    %v183 = vld [vmem:[#allocation13 + $0x70] sm:$0xff]
    %v184 = vld [vmem:[#allocation13 + $0x78] sm:$0xff]
    %v185 = vld [vmem:[#allocation9] sm:$0xff]
    %v186 = vld [vmem:[#allocation9 + $0x8] sm:$0xff]
    %v187 = vld [vmem:[#allocation9 + $0x10] sm:$0xff]
    %v188 = vld [vmem:[#allocation9 + $0x18] sm:$0xff]
    %v189 = vld [vmem:[#allocation9 + $0x20] sm:$0xff]
    %v190 = vld [vmem:[#allocation9 + $0x28] sm:$0xff]
    %v191 = vld [vmem:[#allocation9 + $0x30] sm:$0xff]
    %v192 = vld [vmem:[#allocation9 + $0x38] sm:$0xff]
    %v193 = vld [vmem:[#allocation9 + $0x40] sm:$0xff]
    %v194 = vld [vmem:[#allocation9 + $0x48] sm:$0xff]
    %v195 = vld [vmem:[#allocation9 + $0x50] sm:$0xff]
    %v196 = vld [vmem:[#allocation9 + $0x58] sm:$0xff]
    %v197 = vld [vmem:[#allocation9 + $0x60] sm:$0xff]
    %v198 = vld [vmem:[#allocation9 + $0x68] sm:$0xff]
    %v199 = vld [vmem:[#allocation9 + $0x70] sm:$0xff]
    %v200 = vld [vmem:[#allocation9 + $0x78] sm:$0xff]
    %v201 = vld [vmem:[%s4] sm:$0x1]
    %v203 = vperm.slane %v201, 0
    %205 = vmatpush.msra.mxu0 %v200
    %206 = vmatpush.msra.mxu0 %v199
    %207 = vmatpush.msra.mxu0 %v198
    %208 = vmatpush.msra.mxu0 %v197
    %209 = vmatpush.msra.mxu0 %v196
    %210 = vmatpush.msra.mxu0 %v195
    %211 = vmatpush.msra.mxu0 %v194
    %212 = vmatpush.msra.mxu0 %v193
    %213 = vmatpush.msra.mxu0 %v192
    %214 = vmatpush.msra.mxu0 %v191
    %215 = vmatpush.msra.mxu0 %v190
    %216 = vmatpush.msra.mxu0 %v189
    %217 = vmatpush.msra.mxu0 %v188
    %218 = vmatpush.msra.mxu0 %v187
    %219 = vmatpush.msra.mxu0 %v186
    %220 = vmatpush.msra.mxu0 %v185
    %221 = vmatmul.f32.gmra.mxu0 %v153
    %v222 = vpop.f32.mrf.mxu0
    %v223 = vadd.f32 %v203, %v222
    %224 = vmatmul.f32.gmra.mxu0 %v154
    %v225 = vpop.f32.mrf.mxu0
    %v226 = vadd.f32 %v203, %v225
    %227 = vmatmul.f32.gmra.mxu0 %v155
    %v228 = vpop.f32.mrf.mxu0
    %v229 = vadd.f32 %v203, %v228
    %230 = vmatmul.f32.gmra.mxu0 %v156
    %v231 = vpop.f32.mrf.mxu0
    %v232 = vadd.f32 %v203, %v231
    %233 = vmatmul.f32.gmra.mxu0 %v157
    %v234 = vpop.f32.mrf.mxu0
    %v235 = vadd.f32 %v203, %v234
    %236 = vmatmul.f32.gmra.mxu0 %v158
    %v237 = vpop.f32.mrf.mxu0
    %v238 = vadd.f32 %v203, %v237
    %239 = vmatmul.f32.gmra.mxu0 %v159
    %v240 = vpop.f32.mrf.mxu0
    %v241 = vadd.f32 %v203, %v240
    %242 = vmatmul.f32.gmra.mxu0 %v160
    %v243 = vpop.f32.mrf.mxu0
    %v244 = vadd.f32 %v203, %v243
    %245 = vmatmul.f32.gmra.mxu0 %v161
    %v246 = vpop.f32.mrf.mxu0
    %v247 = vadd.f32 %v203, %v246
    %248 = vmatmul.f32.gmra.mxu0 %v162
    %v249 = vpop.f32.mrf.mxu0
    %v250 = vadd.f32 %v203, %v249
    %251 = vmatmul.f32.gmra.mxu0 %v163
    %v252 = vpop.f32.mrf.mxu0
    %v253 = vadd.f32 %v203, %v252
    %254 = vmatmul.f32.gmra.mxu0 %v164
    %v255 = vpop.f32.mrf.mxu0
    %v256 = vadd.f32 %v203, %v255
    %257 = vmatmul.f32.gmra.mxu0 %v165
    %v258 = vpop.f32.mrf.mxu0
    %v259 = vadd.f32 %v203, %v258
    %260 = vmatmul.f32.gmra.mxu0 %v166
    %v261 = vpop.f32.mrf.mxu0
    %v262 = vadd.f32 %v203, %v261
    %263 = vmatmul.f32.gmra.mxu0 %v167
    %v264 = vpop.f32.mrf.mxu0
    %v265 = vadd.f32 %v203, %v264
    %266 = vmatmul.f32.gmra.mxu0 %v168
    %v267 = vpop.f32.mrf.mxu0
    %v268 = vadd.f32 %v203, %v267
    %269 = vdwg.mxu0
    %v270 = vmul.f32 %v223, 3.0
    %v271 = vmul.f32 %v226, 3.0
    %v272 = vmul.f32 %v229, 3.0
    %v273 = vmul.f32 %v232, 3.0
    %v274 = vmul.f32 %v235, 3.0
    %v275 = vmul.f32 %v238, 3.0
    %v276 = vmul.f32 %v241, 3.0
    %v277 = vmul.f32 %v244, 3.0
    %v278 = vmul.f32 %v247, 3.0
    %v279 = vmul.f32 %v250, 3.0
    %v280 = vmul.f32 %v253, 3.0
    %v281 = vmul.f32 %v256, 3.0
    %v282 = vmul.f32 %v259, 3.0
    %v283 = vmul.f32 %v262, 3.0
    %v284 = vmul.f32 %v265, 3.0
    %v285 = vmul.f32 %v268, 3.0
    %v286 = vtanh.pop %v270
    %v287 = vtanh.pop %v271
    %v288 = vtanh.pop %v272
    %v289 = vtanh.pop %v273
    %v290 = vtanh.pop %v274
    %v291 = vtanh.pop %v275
    %v292 = vtanh.pop %v276
    %v293 = vtanh.pop %v277
    %v294 = vtanh.pop %v278
    %v295 = vtanh.pop %v279
    %v296 = vtanh.pop %v280
    %v297 = vtanh.pop %v281
    %v298 = vtanh.pop %v282
    %v299 = vtanh.pop %v283
    %v300 = vtanh.pop %v284
    %v301 = vtanh.pop %v285
    %v302 = vld [vmem:[#allocation10] sm:$0xff]
    %v303 = vld [vmem:[#allocation10 + $0x8] sm:$0xff]
    %v304 = vld [vmem:[#allocation10 + $0x10] sm:$0xff]
    %v305 = vld [vmem:[#allocation10 + $0x18] sm:$0xff]
    %v306 = vld [vmem:[#allocation10 + $0x20] sm:$0xff]
    %v307 = vld [vmem:[#allocation10 + $0x28] sm:$0xff]
    %v308 = vld [vmem:[#allocation10 + $0x30] sm:$0xff]
    %v309 = vld [vmem:[#allocation10 + $0x38] sm:$0xff]
    %v310 = vld [vmem:[#allocation10 + $0x40] sm:$0xff]
    %v311 = vld [vmem:[#allocation10 + $0x48] sm:$0xff]
    %v312 = vld [vmem:[#allocation10 + $0x50] sm:$0xff]
    %v313 = vld [vmem:[#allocation10 + $0x58] sm:$0xff]
    %v314 = vld [vmem:[#allocation10 + $0x60] sm:$0xff]
    %v315 = vld [vmem:[#allocation10 + $0x68] sm:$0xff]
    %v316 = vld [vmem:[#allocation10 + $0x70] sm:$0xff]
    %v317 = vld [vmem:[#allocation10 + $0x78] sm:$0xff]
    %v318 = vld [vmem:[%s6] sm:$0x1]
    %v320 = vperm.slane %v318, 0
    %322 = vmatpush.msra.mxu0 %v317
    %323 = vmatpush.msra.mxu0 %v316
    %324 = vmatpush.msra.mxu0 %v315
    %325 = vmatpush.msra.mxu0 %v314
    %326 = vmatpush.msra.mxu0 %v313
    %327 = vmatpush.msra.mxu0 %v312
    %328 = vmatpush.msra.mxu0 %v311
    %329 = vmatpush.msra.mxu0 %v310
    %330 = vmatpush.msra.mxu0 %v309
    %331 = vmatpush.msra.mxu0 %v308
    %332 = vmatpush.msra.mxu0 %v307
    %333 = vmatpush.msra.mxu0 %v306
    %334 = vmatpush.msra.mxu0 %v305
    %335 = vmatpush.msra.mxu0 %v304
    %336 = vmatpush.msra.mxu0 %v303
    %337 = vmatpush.msra.mxu0 %v302
    %338 = vmatmul.f32.gmra.mxu0 %v169
    %v339 = vpop.f32.mrf.mxu0
    %v340 = vadd.f32 %v320, %v339
    %341 = vmatmul.f32.gmra.mxu0 %v170
    %v342 = vpop.f32.mrf.mxu0
    %v343 = vadd.f32 %v320, %v342
    %344 = vmatmul.f32.gmra.mxu0 %v171
    %v345 = vpop.f32.mrf.mxu0
    %v346 = vadd.f32 %v320, %v345
    %347 = vmatmul.f32.gmra.mxu0 %v172
    %v348 = vpop.f32.mrf.mxu0
    %v349 = vadd.f32 %v320, %v348
    %350 = vmatmul.f32.gmra.mxu0 %v173
    %v351 = vpop.f32.mrf.mxu0
    %v352 = vadd.f32 %v320, %v351
    %353 = vmatmul.f32.gmra.mxu0 %v174
    %v354 = vpop.f32.mrf.mxu0
    %v355 = vadd.f32 %v320, %v354
    %356 = vmatmul.f32.gmra.mxu0 %v175
    %v357 = vpop.f32.mrf.mxu0
    %v358 = vadd.f32 %v320, %v357
    %359 = vmatmul.f32.gmra.mxu0 %v176
    %v360 = vpop.f32.mrf.mxu0
    %v361 = vadd.f32 %v320, %v360
    %362 = vmatmul.f32.gmra.mxu0 %v177
    %v363 = vpop.f32.mrf.mxu0
    %v364 = vadd.f32 %v320, %v363
    %365 = vmatmul.f32.gmra.mxu0 %v178
    %v366 = vpop.f32.mrf.mxu0
    %v367 = vadd.f32 %v320, %v366
    %368 = vmatmul.f32.gmra.mxu0 %v179
    %v369 = vpop.f32.mrf.mxu0
    %v370 = vadd.f32 %v320, %v369
    %371 = vmatmul.f32.gmra.mxu0 %v180
    %v372 = vpop.f32.mrf.mxu0
    %v373 = vadd.f32 %v320, %v372
    %374 = vmatmul.f32.gmra.mxu0 %v181
    %v375 = vpop.f32.mrf.mxu0
    %v376 = vadd.f32 %v320, %v375
    %377 = vmatmul.f32.gmra.mxu0 %v182
    %v378 = vpop.f32.mrf.mxu0
    %v379 = vadd.f32 %v320, %v378
    %380 = vmatmul.f32.gmra.mxu0 %v183
    %v381 = vpop.f32.mrf.mxu0
    %v382 = vadd.f32 %v320, %v381
    %383 = vmatmul.f32.gmra.mxu0 %v184
    %v384 = vpop.f32.mrf.mxu0
    %v385 = vadd.f32 %v320, %v384
    %386 = vdwg.mxu0
    %v387 = vmul.f32 %v340, 3.0
    %v388 = vmul.f32 %v343, 3.0
    %v389 = vmul.f32 %v346, 3.0
    %v390 = vmul.f32 %v349, 3.0
    %v391 = vmul.f32 %v352, 3.0
    %v392 = vmul.f32 %v355, 3.0
    %v393 = vmul.f32 %v358, 3.0
    %v394 = vmul.f32 %v361, 3.0
    %v395 = vmul.f32 %v364, 3.0
    %v396 = vmul.f32 %v367, 3.0
    %v397 = vmul.f32 %v370, 3.0
    %v398 = vmul.f32 %v373, 3.0
    %v399 = vmul.f32 %v376, 3.0
    %v400 = vmul.f32 %v379, 3.0
    %v401 = vmul.f32 %v382, 3.0
    %v402 = vmul.f32 %v385, 3.0
    %v403 = vtanh.pop %v387
    %v404 = vtanh.pop %v388
    %v405 = vtanh.pop %v389
    %v406 = vtanh.pop %v390
    %v407 = vtanh.pop %v391
    %v408 = vtanh.pop %v392
    %v409 = vtanh.pop %v393
    %v410 = vtanh.pop %v394
    %v411 = vtanh.pop %v395
    %v412 = vtanh.pop %v396
    %v413 = vtanh.pop %v397
    %v414 = vtanh.pop %v398
    %v415 = vtanh.pop %v399
    %v416 = vtanh.pop %v400
    %v417 = vtanh.pop %v401
    %v418 = vtanh.pop %v402
    %v419 = vlaneseq
    %v420 = vshrl.u32 %v419, 7
    %v421 = vadd.s32 %v420, 8
    %v422 = vadd.s32 %v420, 16
    %v423 = vadd.s32 %v420, 24
    %v424 = vadd.s32 %v420, 32
    %v425 = vadd.s32 %v420, 40
    %v426 = vadd.s32 %v420, 48
    %v427 = vadd.s32 %v420, 56
    %v428 = vadd.s32 %v420, 64
    %v429 = vadd.s32 %v420, 72
    %v430 = vadd.s32 %v420, 80
    %v431 = vadd.s32 %v420, 88
    %v432 = vadd.s32 %v420, 96
    %v433 = vadd.s32 %v420, 104
    %v434 = vadd.s32 %v420, 112
    %v435 = vadd.s32 %v420, 120
    %vm436 = vcmp.lt.s32.totalorder %v420, 16
    %vm437 = vcmp.lt.s32.totalorder %v421, 16
    %vm438 = vcmp.lt.s32.totalorder %v422, 16
    %vm439 = vcmp.lt.s32.totalorder %v423, 16
    %vm440 = vcmp.lt.s32.totalorder %v424, 16
    %vm441 = vcmp.lt.s32.totalorder %v425, 16
    %vm442 = vcmp.lt.s32.totalorder %v426, 16
    %vm443 = vcmp.lt.s32.totalorder %v427, 16
    %vm444 = vcmp.lt.s32.totalorder %v428, 16
    %vm445 = vcmp.lt.s32.totalorder %v429, 16
    %vm446 = vcmp.lt.s32.totalorder %v430, 16
    %vm447 = vcmp.lt.s32.totalorder %v431, 16
    %vm448 = vcmp.lt.s32.totalorder %v432, 16
    %vm449 = vcmp.lt.s32.totalorder %v433, 16
    %vm450 = vcmp.lt.s32.totalorder %v434, 16
    %vm451 = vcmp.lt.s32.totalorder %v435, 16
    %v452 = vsel %vm436, %v286, 0.0
    %v453 = vsel %vm437, %v287, 0.0
    %v454 = vsel %vm438, %v288, 0.0
    %v455 = vsel %vm439, %v289, 0.0
    %v456 = vsel %vm440, %v290, 0.0
    %v457 = vsel %vm441, %v291, 0.0
    %v458 = vsel %vm442, %v292, 0.0
    %v459 = vsel %vm443, %v293, 0.0
    %v460 = vsel %vm444, %v294, 0.0
    %v461 = vsel %vm445, %v295, 0.0
    %v462 = vsel %vm446, %v296, 0.0
    %v463 = vsel %vm447, %v297, 0.0
    %v464 = vsel %vm448, %v298, 0.0
    %v465 = vsel %vm449, %v299, 0.0
    %v466 = vsel %vm450, %v300, 0.0
    %v467 = vsel %vm451, %v301, 0.0
    %468 = vst [vmem:[#allocation12] sm:$0xff] %v452
    %469 = vst [vmem:[#allocation12 + $0x8] sm:$0xff] %v453
    %470 = vst [vmem:[#allocation12 + $0x10] sm:$0xff] %v454
    %471 = vst [vmem:[#allocation12 + $0x18] sm:$0xff] %v455
    %472 = vst [vmem:[#allocation12 + $0x20] sm:$0xff] %v456
    %473 = vst [vmem:[#allocation12 + $0x28] sm:$0xff] %v457
    %474 = vst [vmem:[#allocation12 + $0x30] sm:$0xff] %v458
    %475 = vst [vmem:[#allocation12 + $0x38] sm:$0xff] %v459
    %476 = vst [vmem:[#allocation12 + $0x40] sm:$0xff] %v460
    %477 = vst [vmem:[#allocation12 + $0x48] sm:$0xff] %v461
    %478 = vst [vmem:[#allocation12 + $0x50] sm:$0xff] %v462
    %479 = vst [vmem:[#allocation12 + $0x58] sm:$0xff] %v463
    %480 = vst [vmem:[#allocation12 + $0x60] sm:$0xff] %v464
    %481 = vst [vmem:[#allocation12 + $0x68] sm:$0xff] %v465
    %482 = vst [vmem:[#allocation12 + $0x70] sm:$0xff] %v466
    %483 = vst [vmem:[#allocation12 + $0x78] sm:$0xff] %v467
    %v484 = vsel %vm436, %v403, 0.0
    %v485 = vsel %vm437, %v404, 0.0
    %v486 = vsel %vm438, %v405, 0.0
    %v487 = vsel %vm439, %v406, 0.0
    %v488 = vsel %vm440, %v407, 0.0
    %v489 = vsel %vm441, %v408, 0.0
    %v490 = vsel %vm442, %v409, 0.0
    %v491 = vsel %vm443, %v410, 0.0
    %v492 = vsel %vm444, %v411, 0.0
    %v493 = vsel %vm445, %v412, 0.0
    %v494 = vsel %vm446, %v413, 0.0
    %v495 = vsel %vm447, %v414, 0.0
    %v496 = vsel %vm448, %v415, 0.0
    %v497 = vsel %vm449, %v416, 0.0
    %v498 = vsel %vm450, %v417, 0.0
    %v499 = vsel %vm451, %v418, 0.0
    %500 = vst [vmem:[#allocation13] sm:$0xff] %v484
    %501 = vst [vmem:[#allocation13 + $0x8] sm:$0xff] %v485
    %502 = vst [vmem:[#allocation13 + $0x10] sm:$0xff] %v486
    %503 = vst [vmem:[#allocation13 + $0x18] sm:$0xff] %v487
    %504 = vst [vmem:[#allocation13 + $0x20] sm:$0xff] %v488
    %505 = vst [vmem:[#allocation13 + $0x28] sm:$0xff] %v489
    %506 = vst [vmem:[#allocation13 + $0x30] sm:$0xff] %v490
    %507 = vst [vmem:[#allocation13 + $0x38] sm:$0xff] %v491
    %508 = vst [vmem:[#allocation13 + $0x40] sm:$0xff] %v492
    %509 = vst [vmem:[#allocation13 + $0x48] sm:$0xff] %v493
    %510 = vst [vmem:[#allocation13 + $0x50] sm:$0xff] %v494
    %511 = vst [vmem:[#allocation13 + $0x58] sm:$0xff] %v495
    %512 = vst [vmem:[#allocation13 + $0x60] sm:$0xff] %v496
    %513 = vst [vmem:[#allocation13 + $0x68] sm:$0xff] %v497
    %514 = vst [vmem:[#allocation13 + $0x70] sm:$0xff] %v498
    %515 = vst [vmem:[#allocation13 + $0x78] sm:$0xff] %v499
    // Predicated region
    $region57: #{tpu_custom_call.1} parent=1 // pred_check
      _
    $region58: #{tpu_custom_call.1} parent=1 // pred_check_branch
      %517 = sbr.rel (0) target = $region60
    $region59: #{tpu_custom_call.1} parent=1 // pred_region
      %519 = vsyncadd [#allocation4], 0
      %s520 = sshll.u32 [#allocation12], 4
      %s521 = int_to_ptr.vmem [resolvable:$true] %s520
      %s522 = sshll.u32 %s7, 4
      %s523 = int_to_ptr.hbm [resolvable:$true] %s522
      %528 = dma.vmem_to_hbm [thread:$0]  %s521, 2048, %s523, [#allocation4], 128, 128, 8
    $region60: #{tpu_custom_call.1} parent=1 // pred_fallthru
      _
    // Predicated region
    $region61: #{tpu_custom_call.1} parent=1 // pred_check
      _
    $region62: #{tpu_custom_call.1} parent=1 // pred_check_branch
      %530 = sbr.rel (0) target = $region64
    $region63: #{tpu_custom_call.1} parent=1 // pred_region
      %532 = vsyncadd [#allocation14], 0
      %s533 = sshll.u32 [#allocation13], 4
      %s534 = int_to_ptr.vmem [resolvable:$true] %s533
      %s535 = sshll.u32 %s8, 4
      %s536 = int_to_ptr.hbm [resolvable:$true] %s535
      %541 = dma.vmem_to_hbm [thread:$0]  %s534, 2048, %s536, [#allocation14], 128, 128, 8
    $region64: #{tpu_custom_call.1} parent=1 // pred_fallthru
      _
    // Predicated region
    $region65: #{tpu_custom_call.1} parent=1 // pred_check
      _
    $region66: #{tpu_custom_call.1} parent=1 // pred_check_branch
      %543 = sbr.rel (0) target = $region68
    $region67: #{tpu_custom_call.1} parent=1 // pred_region
      %545 = dma.done [#allocation4], 2048
    $region68: #{tpu_custom_call.1} parent=1 // pred_fallthru
      _
    // Predicated region
    $region69: #{tpu_custom_call.1} parent=1 // pred_check
      _
    $region70: #{tpu_custom_call.1} parent=1 // pred_check_branch
      %547 = sbr.rel (0) target = $region72
    $region71: #{tpu_custom_call.1} parent=1 // pred_region
      %549 = dma.done [#allocation14], 2048
    $region72: #{tpu_custom_call.1} parent=1 // pred_fallthru
      _
    %550 = vsyncpa [#allocation3], 1
    %551 = vsyncpa [#allocation8], 1
    %552 = vsyncpa [#allocation11], 1
    %553 = vsyncpa [#allocation4], 1
    %554 = vsyncpa [#allocation14], 1
    %555 = vsyncpa [#allocation5], 1

</llo_original>
